<compile_context>
chip_gen: v7x
topology: tpu7x:2x2x1
jax: 0.10.0
libtpu: 0.0.40
codegen_flags: <defaults>
</compile_context>

<pallas_src>
import jax
import jax.numpy as jnp
from jax.experimental import pallas as pl
from jax.experimental.pallas import tpu as pltpu


def _round_up(n, m):
    return ((n + m - 1) // m) * m


def _attention_kernel(x_ref, wqkv_ref, wu_ref, bu_ref, o_ref, acc_ref):
    """One (batch-pack, head) grid step of SelfAttentionWide.

    x_ref    : (BT, t, ep)    bf16  BT packed batch elements (embedding padded to ep)
    wqkv_ref : (1, ep, 3*ep)  bf16  this head's fused [Wq|Wk|Wv] (x @ W form;
                                    the 1/sqrt(e) scale is folded into the Wq third)
    wu_ref   : (1, ep, ep)    bf16  this head's slice of the unifyheads weight
    bu_ref   : (1, ep)        f32   unifyheads bias (padded)
    o_ref    : (BT, t, ep)    bf16  output block (written once, at the last head)
    acc_ref  : (BT, t, ep)    f32   VMEM accumulator across the head grid axis
    """
    hi = pl.program_id(1)
    bt, t, ep = x_ref.shape

    @pl.when(hi == 0)
    def _init():
        # Bias added exactly once: accumulator starts at the broadcast bias.
        acc_ref[...] = jnp.broadcast_to(bu_ref[...], (bt, t, ep)).astype(jnp.float32)

    # Fused QKV projection for all BT*t rows at once: one wide MXU matmul.
    x2d = x_ref[...].reshape(bt * t, ep)                                   # bf16
    qkv = jnp.dot(x2d, wqkv_ref[0], preferred_element_type=jnp.float32)    # (BT*t, 3ep) f32

    q = qkv[:, :ep].astype(jnp.bfloat16).reshape(bt, t, ep)   # scale already in Wq
    k = qkv[:, ep:2 * ep].astype(jnp.bfloat16).reshape(bt, t, ep)
    v = qkv[:, 2 * ep:].astype(jnp.bfloat16).reshape(bt, t, ep)

    # Q K^T per packed batch element (contract last dims; no materialized k.T).
    scores = jnp.einsum("bqd,bkd->bqk", q, k,
                        preferred_element_type=jnp.float32)                # (BT, t, t) f32

    # TODO(synk): causal mask path (mask=True) not implemented; wrapper rejects it.
    # TODO(synk): for very long sequences (t >= ~1024) tile the query axis here so
    #             the live f32 scores are (tq, t) rather than (t, t).

    # Softmax over the key axis, kept in f32.
    m = jnp.max(scores, axis=-1, keepdims=True)
    p = jnp.exp(scores - m)
    attn = p * pl.reciprocal(jnp.sum(p, axis=-1, keepdims=True), approx=True)

    out_h = jnp.einsum("bqk,bkd->bqd", attn.astype(jnp.bfloat16), v,
                       preferred_element_type=jnp.float32)                 # (BT, t, ep) f32

    # This head's contribution of the unifyheads projection, accumulated in f32.
    contrib = jnp.dot(out_h.reshape(bt * t, ep).astype(jnp.bfloat16), wu_ref[0],
                      preferred_element_type=jnp.float32)                  # (BT*t, ep) f32
    acc_ref[...] += contrib.reshape(bt, t, ep)

    @pl.when(hi == pl.num_programs(1) - 1)
    def _finalize():
        o_ref[...] = acc_ref[...].astype(o_ref.dtype)


def prepare_weights(wq, wk, wv, wu, bu, *, heads):
    """Reshuffle / pad / stack / pre-scale the PyTorch-layout weights once.

    wq, wk, wv : (heads*e, e)   nn.Linear weight layout (out_features, in_features)
    wu         : (e, heads*e)
    bu         : (e,)
    Returns (wqkv, wu_h, bu_p) ready for the Pallas kernel.
    """
    h = heads
    e = wq.shape[1]
    ep = _round_up(e, 128)
    pad = ep - e
    scale = 1.0 / float(e) ** 0.5     # == (e**-0.25) applied to both q and k in the ref

    def per_head(w):
        # x @ w.T has output index o = head*e + dim  ->  (h, e_in, e_out), x @ W form.
        return w.T.reshape(e, h, e).transpose(1, 0, 2)

    def pad_he(w):  # zero-pad both (in, out) dims of an (h, e, e) slab
        return jnp.pad(w, ((0, 0), (0, pad), (0, pad)))

    wq_h = pad_he(per_head(wq) * jnp.float32(scale))   # fold 1/sqrt(e) into Wq
    wk_h = pad_he(per_head(wk))
    wv_h = pad_he(per_head(wv))
    # Fused per-head [Wq | Wk | Wv] -> one (ep, 3*ep) matmul per head in the kernel.
    wqkv = jnp.concatenate([wq_h, wk_h, wv_h], axis=2).astype(jnp.bfloat16)

    # unifyheads: out(b,t,h*e) @ wu.T, h*e head-major -> per-head (e, e) slabs.
    wu_h = pad_he(wu.T.reshape(h, e, e)).astype(jnp.bfloat16)
    bu_p = jnp.pad(bu, (0, pad)).reshape(1, ep).astype(jnp.float32)
    return wqkv, wu_h, bu_p


def _vmem_limit_bytes(bt, t, ep):
    x_blk = bt * t * ep * 2                      # bf16 input block
    out_blk = bt * t * ep * 2                    # bf16 output block
    w_blk = (ep * 3 * ep + ep * ep) * 2          # per-head bf16 weight blocks
    acc_blk = bt * t * ep * 4                    # f32 accumulator scratch
    bias_blk = ep * 4
    need = 2 * (x_blk + out_blk + w_blk) + acc_blk + bias_blk   # double-buffered I/O
    # 2x margin for compiler scratch/intermediates; floor at the default 32 MiB
    # scoped limit; cap at 56 MiB (>= 8 MiB headroom on v7x's 64 MiB physical VMEM).
    return int(min(max(2 * need, 32 << 20), 56 << 20))


@jax.jit
def self_attention_wide_prepared(x, wqkv, wu_h, bu_p):
    """Forward pass given already-prepared (padded, bf16, fused, pre-scaled) weights."""
    b, t, e = x.shape
    h, ep, _ = wqkv.shape

    # Pack multiple batch elements per grid step when t is small so the MXU M
    # dimension (BT*t rows) of the projection / unifyheads matmuls is filled.
    BT = max(1, min(b, -(-256 // t)))
    b_pad = _round_up(b, BT)

    # Lane-dense presentation: pad embedding to a multiple of 128, move bf16 over DMA.
    x_p = jnp.pad(x, ((0, b_pad - b), (0, 0), (0, ep - e))).astype(jnp.bfloat16)

    out = pl.pallas_call(
        _attention_kernel,
        out_shape=jax.ShapeDtypeStruct((b_pad, t, ep), jnp.bfloat16),
        grid=(b_pad // BT, h),                                         # head axis innermost
        in_specs=[
            pl.BlockSpec((BT, t, ep), lambda bi, hi: (bi, 0, 0)),      # x: per batch-pack
            pl.BlockSpec((1, ep, 3 * ep), lambda bi, hi: (hi, 0, 0)),  # wqkv: per head
            pl.BlockSpec((1, ep, ep), lambda bi, hi: (hi, 0, 0)),      # wu:   per head
            pl.BlockSpec((1, ep), lambda bi, hi: (0, 0)),              # bias: grid-invariant
        ],
        out_specs=pl.BlockSpec((BT, t, ep), lambda bi, hi: (bi, 0, 0)),
        scratch_shapes=[pltpu.VMEM((BT, t, ep), jnp.float32)],         # head accumulator
        compiler_params=pltpu.CompilerParams(
            dimension_semantics=("parallel", "arbitrary"),   # batch parallel, heads reduce
            vmem_limit_bytes=_vmem_limit_bytes(BT, t, ep),
        ),
    )(x_p, wqkv, wu_h, bu_p)

    # Un-pad only if padding actually happened; cast back to the input dtype to
    # preserve the module's output dtype (the bf16 result could be consumed
    # directly by a downstream kernel to skip this copy).
    if b_pad != b:
        out = out[:b]
    if ep != e:
        out = out[..., :e]
    return out.astype(x.dtype)


def self_attention_wide(x, wq, wk, wv, wu, bu, *, heads, mask=False):
    """Pallas implementation of SelfAttentionWide.forward.

    x  : (b, t, e) float32
    wq, wk, wv : (e*heads, e)  -- PyTorch nn.Linear weight layout (out, in), no bias
    wu : (e, heads*e)          -- unifyheads weight (out, in)
    bu : (e,)                  -- unifyheads bias
    """
    if mask:
        # TODO(synk): causal mask path (mask=True) not implemented.
        raise NotImplementedError("mask=True is not supported by this kernel")
    wqkv, wu_h, bu_p = prepare_weights(wq, wk, wv, wu, bu, heads=heads)
    return self_attention_wide_prepared(x, wqkv, wu_h, bu_p)


def self_attention_wide_ref(x, wq, wk, wv, wu, bu, *, heads):
    """Pure-JAX f32 reference mirroring the PyTorch forward exactly."""
    b, t, e = x.shape
    h = heads
    keys = (x @ wk.T).reshape(b, t, h, e)
    queries = (x @ wq.T).reshape(b, t, h, e)
    values = (x @ wv.T).reshape(b, t, h, e)

    keys = keys.transpose(0, 2, 1, 3).reshape(b * h, t, e)
    queries = queries.transpose(0, 2, 1, 3).reshape(b * h, t, e)
    values = values.transpose(0, 2, 1, 3).reshape(b * h, t, e)

    queries = queries / e ** (1 / 4)
    keys = keys / e ** (1 / 4)

    dot = jnp.einsum("bqe,bke->bqk", queries, keys)
    dot = jax.nn.softmax(dot, axis=2)
    out = jnp.einsum("bqk,bke->bqe", dot, values).reshape(b, h, t, e)
    out = out.transpose(0, 2, 1, 3).reshape(b, t, h * e)
    return out @ wu.T + bu


if __name__ == "__main__":
    # Small, deterministic example consistent with the module's forward:
    # x : (batch=2, seq=8, emb=32), heads=4
    b, t, e, heads = 2, 8, 32, 4

    key = jax.random.PRNGKey(0)
    kx, kq, kk, kv, ku, kb = jax.random.split(key, 6)

    x = jax.random.normal(kx, (b, t, e), dtype=jnp.float32)
    # nn.Linear weight shapes: (out_features, in_features)
    wq = jax.random.normal(kq, (e * heads, e), dtype=jnp.float32) * 0.1
    wk = jax.random.normal(kk, (e * heads, e), dtype=jnp.float32) * 0.1
    wv = jax.random.normal(kv, (e * heads, e), dtype=jnp.float32) * 0.1
    wu = jax.random.normal(ku, (e, heads * e), dtype=jnp.float32) * 0.1
    bu = jax.random.normal(kb, (e,), dtype=jnp.float32) * 0.1

    out = self_attention_wide(x, wq, wk, wv, wu, bu, heads=heads)
    out = jax.block_until_ready(out)

    ref = self_attention_wide_ref(x, wq, wk, wv, wu, bu, heads=heads)
    assert out.shape == (b, t, e)
    # bf16 MXU inputs / bf16 output (f32 accumulation) => loosened tolerance vs f32 ref.
    assert jnp.allclose(out, ref, atol=2e-2, rtol=2e-2), (
        f"max abs err = {jnp.max(jnp.abs(out - ref))}"
    )

    print("KERNEL_OK")
</pallas_src>

<mosaic_0001>
module attributes {stable_mosaic.version = 11 : i64} {
  func.func @_attention_kernel(%arg0: i32, %arg1: i32, %arg2: memref<2x8x128xbf16, #tpu.memory_space<vmem>>, %arg3: memref<1x128x384xbf16, #tpu.memory_space<vmem>>, %arg4: memref<1x128x128xbf16, #tpu.memory_space<vmem>>, %arg5: memref<1x128xf32, #tpu.memory_space<vmem>>, %arg6: memref<2x8x128xbf16, #tpu.memory_space<vmem>>, %arg7: memref<2x8x128xf32, #tpu.memory_space<vmem>>) attributes {dimension_semantics = [#tpu.dimension_semantics<parallel>, #tpu.dimension_semantics<arbitrary>], iteration_bounds = array<i64: 1, 4>, scalar_prefetch = 0 : i64, scratch_operands = 1 : i64, tpu.core_type = #tpu.core_type<tc>, window_params = [{transform_indices = @transform_0, window_bounds = array<i64: 2, 8, 128>}, {transform_indices = @transform_1, window_bounds = array<i64: 1, 128, 384>}, {transform_indices = @transform_2, window_bounds = array<i64: 1, 128, 128>}, {pipeline_mode = #tpu.pipeline_mode<synchronous>, transform_indices = @transform_3, window_bounds = array<i64: 1, 128>}, {transform_indices = @transform_4, window_bounds = array<i64: 2, 8, 128>}]} {
    %c0_i32 = arith.constant 0 : i32
    %0 = arith.cmpi eq, %arg1, %c0_i32 : i32
    %1 = arith.extui %0 : i1 to i32
    %c0_i32_0 = arith.constant 0 : i32
    %2 = arith.cmpi ne, %1, %c0_i32_0 : i32
    scf.if %2 {
      %c0_21 = arith.constant 0 : index
      %c0_22 = arith.constant 0 : index
      %42 = vector.load %arg5[%c0_21, %c0_22] : memref<1x128xf32, #tpu.memory_space<vmem>>, vector<1x128xf32>
      %43 = vector.shape_cast %42 : vector<1x128xf32> to vector<1x1x128xf32>
      %44 = vector.broadcast %43 : vector<1x1x128xf32> to vector<2x8x128xf32>
      %c0_23 = arith.constant 0 : index
      %c0_24 = arith.constant 0 : index
      %c0_25 = arith.constant 0 : index
      %45 = vector.load %arg7[%c0_23, %c0_24, %c0_25] : memref<2x8x128xf32, #tpu.memory_space<vmem>>, vector<2x8x128xf32>
      tpu.vector_store %arg7[%c0_23, %c0_24, %c0_25], %44 {strides = array<i32>} : memref<2x8x128xf32, #tpu.memory_space<vmem>>, vector<2x8x128xf32>,
    } else {
    }
    %c0 = arith.constant 0 : index
    %c0_1 = arith.constant 0 : index
    %c0_2 = arith.constant 0 : index
    %3 = vector.load %arg2[%c0, %c0_1, %c0_2] : memref<2x8x128xbf16, #tpu.memory_space<vmem>>, vector<2x8x128xbf16>
    %4 = vector.shape_cast %3 : vector<2x8x128xbf16> to vector<16x128xbf16>
    %c0_3 = arith.constant 0 : index
    %c0_4 = arith.constant 0 : index
    %c0_5 = arith.constant 0 : index
    %5 = vector.load %arg3[%c0_3, %c0_4, %c0_5] : memref<1x128x384xbf16, #tpu.memory_space<vmem>>, vector<1x128x384xbf16>
    %6 = vector.shape_cast %5 : vector<1x128x384xbf16> to vector<128x384xbf16>
    %cst = arith.constant dense<0.000000e+00> : vector<16x384xf32>
    %7 = tpu.matmul %4, %6, %cst {dimension_numbers = #tpu.dot_dimension_numbers<[1], [0], [0], [1], [0, 0, 1, 1], [], []>} : vector<16x128xbf16>, vector<128x384xbf16>, vector<16x384xf32> -> vector<16x384xf32>
    %8 = vector.extract_strided_slice %7 {offsets = [0, 0], sizes = [16, 128], strides = [1, 1]} : vector<16x384xf32> to vector<16x128xf32>
    %9 = arith.truncf %8 : vector<16x128xf32> to vector<16x128xbf16>
    %10 = vector.shape_cast %9 : vector<16x128xbf16> to vector<2x8x128xbf16>
    %11 = vector.extract_strided_slice %7 {offsets = [0, 128], sizes = [16, 128], strides = [1, 1]} : vector<16x384xf32> to vector<16x128xf32>
    %12 = arith.truncf %11 : vector<16x128xf32> to vector<16x128xbf16>
    %13 = vector.shape_cast %12 : vector<16x128xbf16> to vector<2x8x128xbf16>
    %14 = vector.extract_strided_slice %7 {offsets = [0, 256], sizes = [16, 128], strides = [1, 1]} : vector<16x384xf32> to vector<16x128xf32>
    %15 = arith.truncf %14 : vector<16x128xf32> to vector<16x128xbf16>
    %16 = vector.shape_cast %15 : vector<16x128xbf16> to vector<2x8x128xbf16>
    "tpu.trace_start"() <{level = 10 : i32, message = "bqd,bkd->bqk"}> : () -> ()
    %cst_6 = arith.constant dense<0.000000e+00> : vector<2x8x8xf32>
    %17 = tpu.matmul %10, %13, %cst_6 {dimension_numbers = #tpu.dot_dimension_numbers<[2], [2], [1], [1], [0, 0, 0, 1, 1, 1], [0], [0]>} : vector<2x8x128xbf16>, vector<2x8x128xbf16>, vector<2x8x8xf32> -> vector<2x8x8xf32>
    "tpu.trace_stop"() : () -> ()
    %cst_7 = arith.constant dense<0xFF800000> : vector<2x8xf32>
    %18 = vector.multi_reduction <maximumf>, %17, %cst_7 [2] : vector<2x8x8xf32> to vector<2x8xf32>
    %19 = vector.shape_cast %18 : vector<2x8xf32> to vector<2x8x1xf32>
    %20 = vector.broadcast %19 : vector<2x8x1xf32> to vector<2x8x8xf32>
    %21 = arith.subf %17, %20 : vector<2x8x8xf32>
    %22 = math.exp %21 : vector<2x8x8xf32>
    %cst_8 = arith.constant dense<0.000000e+00> : vector<2x8xf32>
    %23 = vector.multi_reduction <add>, %22, %cst_8 [2] : vector<2x8x8xf32> to vector<2x8xf32>
    %24 = vector.shape_cast %23 : vector<2x8xf32> to vector<2x8x1xf32>
    %25 = tpu.reciprocal %24 {approx = true} : vector<2x8x1xf32> -> vector<2x8x1xf32>
    %26 = vector.broadcast %25 : vector<2x8x1xf32> to vector<2x8x8xf32>
    %27 = arith.mulf %22, %26 : vector<2x8x8xf32>
    %28 = arith.truncf %27 : vector<2x8x8xf32> to vector<2x8x8xbf16>
    "tpu.trace_start"() <{level = 10 : i32, message = "bqk,bkd->bqd"}> : () -> ()
    %cst_9 = arith.constant dense<0.000000e+00> : vector<2x8x128xf32>
    %29 = tpu.matmul %28, %16, %cst_9 {dimension_numbers = #tpu.dot_dimension_numbers<[2], [1], [1], [2], [0, 0, 0, 1, 1, 2], [0], [0]>} : vector<2x8x8xbf16>, vector<2x8x128xbf16>, vector<2x8x128xf32> -> vector<2x8x128xf32>
    "tpu.trace_stop"() : () -> ()
    %30 = vector.shape_cast %29 : vector<2x8x128xf32> to vector<16x128xf32>
    %31 = arith.truncf %30 : vector<16x128xf32> to vector<16x128xbf16>
    %c0_10 = arith.constant 0 : index
    %c0_11 = arith.constant 0 : index
    %c0_12 = arith.constant 0 : index
    %32 = vector.load %arg4[%c0_10, %c0_11, %c0_12] : memref<1x128x128xbf16, #tpu.memory_space<vmem>>, vector<1x128x128xbf16>
    %33 = vector.shape_cast %32 : vector<1x128x128xbf16> to vector<128x128xbf16>
    %cst_13 = arith.constant dense<0.000000e+00> : vector<16x128xf32>
    %34 = tpu.matmul %31, %33, %cst_13 {dimension_numbers = #tpu.dot_dimension_numbers<[1], [0], [0], [1], [0, 0, 1, 1], [], []>} : vector<16x128xbf16>, vector<128x128xbf16>, vector<16x128xf32> -> vector<16x128xf32>
    %c0_14 = arith.constant 0 : index
    %c0_15 = arith.constant 0 : index
    %c0_16 = arith.constant 0 : index
    %35 = vector.load %arg7[%c0_14, %c0_15, %c0_16] : memref<2x8x128xf32, #tpu.memory_space<vmem>>, vector<2x8x128xf32>
    %36 = vector.shape_cast %34 : vector<16x128xf32> to vector<2x8x128xf32>
    %37 = arith.addf %35, %36 : vector<2x8x128xf32>
    %c0_17 = arith.constant 0 : index
    %c0_18 = arith.constant 0 : index
    %c0_19 = arith.constant 0 : index
    %38 = vector.load %arg7[%c0_17, %c0_18, %c0_19] : memref<2x8x128xf32, #tpu.memory_space<vmem>>, vector<2x8x128xf32>
    tpu.vector_store %arg7[%c0_17, %c0_18, %c0_19], %37 {strides = array<i32>} : memref<2x8x128xf32, #tpu.memory_space<vmem>>, vector<2x8x128xf32>,
    %c3_i32 = arith.constant 3 : i32
    %39 = arith.cmpi eq, %arg1, %c3_i32 : i32
    %40 = arith.extui %39 : i1 to i32
    %c0_i32_20 = arith.constant 0 : i32
    %41 = arith.cmpi ne, %40, %c0_i32_20 : i32
    scf.if %41 {
      %c0_21 = arith.constant 0 : index
      %c0_22 = arith.constant 0 : index
      %c0_23 = arith.constant 0 : index
      %42 = vector.load %arg7[%c0_21, %c0_22, %c0_23] : memref<2x8x128xf32, #tpu.memory_space<vmem>>, vector<2x8x128xf32>
      %43 = arith.truncf %42 : vector<2x8x128xf32> to vector<2x8x128xbf16>
      %c0_24 = arith.constant 0 : index
      %c0_25 = arith.constant 0 : index
      %c0_26 = arith.constant 0 : index
      %44 = vector.load %arg6[%c0_24, %c0_25, %c0_26] : memref<2x8x128xbf16, #tpu.memory_space<vmem>>, vector<2x8x128xbf16>
      tpu.vector_store %arg6[%c0_24, %c0_25, %c0_26], %43 {strides = array<i32>} : memref<2x8x128xbf16, #tpu.memory_space<vmem>>, vector<2x8x128xbf16>,
    } else {
    }
    return
  }
  func.func @transform_0(%arg0: i32, %arg1: i32) -> (i32, i32, i32) {
    %c0_i32 = arith.constant 0 : i32
    %c0_i32_0 = arith.constant 0 : i32
    %c0_i32_1 = arith.constant 0 : i32
    return %arg0, %c0_i32, %c0_i32_0 : i32, i32, i32
  }
  func.func @transform_1(%arg0: i32, %arg1: i32) -> (i32, i32, i32) {
    %c0_i32 = arith.constant 0 : i32
    %c0_i32_0 = arith.constant 0 : i32
    %c0_i32_1 = arith.constant 0 : i32
    return %arg1, %c0_i32, %c0_i32_0 : i32, i32, i32
  }
  func.func @transform_2(%arg0: i32, %arg1: i32) -> (i32, i32, i32) {
    %c0_i32 = arith.constant 0 : i32
    %c0_i32_0 = arith.constant 0 : i32
    %c0_i32_1 = arith.constant 0 : i32
    return %arg1, %c0_i32, %c0_i32_0 : i32, i32, i32
  }
  func.func @transform_3(%arg0: i32, %arg1: i32) -> (i32, i32) {
    %c0_i32 = arith.constant 0 : i32
    %c0_i32_0 = arith.constant 0 : i32
    %c0_i32_1 = arith.constant 0 : i32
    return %c0_i32, %c0_i32_0 : i32, i32
  }
  func.func @transform_4(%arg0: i32, %arg1: i32) -> (i32, i32, i32) {
    %c0_i32 = arith.constant 0 : i32
    %c0_i32_0 = arith.constant 0 : i32
    %c0_i32_1 = arith.constant 0 : i32
    return %arg0, %c0_i32, %c0_i32_0 : i32, i32, i32
  }
}

</mosaic_0001>

<llo_original>
// kernel: self_attention_wide_prepared.1
$region0: #{self_attention_wide_prepared.1}
  #allocation0 [shape = 'u32[]', space=smem, size = 0x4, offset = 0x4, fixed_abs, tag = 'smem constant byte address 0x4 - core index']
  #allocation1 [shape = 'u32[144,128]{1,0:T(1,128)}', space=vmem, size = 0x12000, scoped, tag = 'internal scratch']
  #allocation2 [shape = 'f32[2,8,128]{2,1,0:T(8,128)}', space=vmem, size = 0x2000, scoped, tag = 'scratch operand']
  %s0 = inlined_call_operand.vmem [shape: bf16[2,8,128], index: 0, kind: input, shape index: {}]
  %s1 = inlined_call_operand.hbm [shape: bf16[4,128,384], index: 1, kind: input, shape index: {}]
  %s2 = inlined_call_operand.hbm [shape: bf16[4,128,128], index: 2, kind: input, shape index: {}]
  %s3 = inlined_call_operand.vmem [shape: f32[1,128], index: 3, kind: input, shape index: {}]
  %s4 = inlined_call_operand.vmem [shape: bf16[2,8,128], index: 4, kind: output, shape index: {}]
  %s5 = sld [smem:[#allocation0]]
  $region65: #{self_attention_wide_prepared.1} parent=0
    _
  %s7 = ssub.s32 1, %s5
  %s8 = scalar_select 0, %s7, %s5
  $region1: #{self_attention_wide_prepared.1} parent=0
    #allocation3 [shape = 'u8[196608]{0}', space=vmem, size = 0x30000, scoped, tag = 'input window, operand 1']
    #allocation4 [shape = 's32[2]{0}', space=sflag, size = 0x8, scoped, tag = 'scoped memory for self_attention_wide_prepared.1']
    #allocation5 [shape = 'u8[65536]{0}', space=vmem, size = 0x10000, scoped, tag = 'input window, operand 2']
    #allocation6 [shape = 's32[2]{0}', space=sflag, size = 0x8, scoped, tag = 'scoped memory for self_attention_wide_prepared.1']
    %9 = vsyncpa [#allocation4], 0
    %s10 = scalar_lea.sflag [#allocation4], 1
    %11 = vsyncpa %s10, 0
    %12 = vsyncpa [#allocation6], 0
    %s13 = scalar_lea.sflag [#allocation6], 1
    %14 = vsyncpa %s13, 0
    loop: start=0, step=1, limit=6
    $region2: #{self_attention_wide_prepared.1} parent=1 // loop_pre_header
      _
    $region3: #{self_attention_wide_prepared.1} parent=1 // loop_header
      %s16 = sphi 0, %s20
      %p17 = scmp.ge.s32.totalorder %s16, 6
      %s23 = sphi 0, %s35
      %s24 = sphi 0, %s31
      %s25 = sphi 0, %s23
      %s26 = sphi 0, %s24
      %s27 = sphi 0, %s25
      %s28 = sphi 0, %s26
      %s38 = sphi 0, %s40
      %s41 = sphi 0, %s38
      %s42 = sphi 0, %s41
      %s58 = sphi 0, %s42
      %s64 = sphi 0, %s66
      %s67 = sphi 0, %s64
      %s68 = sphi 0, %s67
      %s84 = sphi 0, %s68
      %s90 = sphi 0, %s92
      %s93 = sphi 0, %s90
      %s94 = sphi 0, %s93
      %s110 = sphi 0, %s94
      %s114 = sphi 0, %s114
      %s116 = sphi 0, %s114
      %s117 = sphi 0, %s116
      %s131 = sphi 0, %s117
      %s137 = sphi 0, %s139
      %s140 = sphi 0, %s137
      %s141 = sphi 0, %s140
      %s157 = sphi 0, %s141
    $region4: #{self_attention_wide_prepared.1} parent=1 // loop_header_branch
      %19 = sbr.rel (%p17) target = $region8
    $region5: #{self_attention_wide_prepared.1} parent=1 // loop_body
      %s21 = ssub.s32 %s16, 1
      %s22 = ssub.s32 %s16, 2
      %s29 = sadd.s32 1, %s24
      %p30 = scmp.ge.s32.totalorder %s29, 4
      %s31 = scalar_select %p30, 0, %s29
      %s32 = sadd.s32 1, %s23
      %s33 = scalar_select %p30, %s32, %s23
      %p34 = scmp.ge.s32.totalorder %s33, 1
      %s35 = scalar_select %p34, 0, %s33
      %s36 = ssub.s32 %s23, %s35
      %p37 = scmp.eq.s32.totalorder %s36, 0
      %s39 = sadd.s32 %s38, 1
      %s40 = scalar_select %p37, %s38, %s39
      %p43 = pneg %p37
      %p44 = scmp.eq.s32.totalorder %s16, 3
      %p45 = por %p43, %p44
      %p46 = scmp.ne.s32.totalorder %s38, %s41
      %p47 = scmp.eq.s32.totalorder %s16, 0
      %p48 = por %p46, %p47
      %p49 = scmp.ne.s32.totalorder %s38, %s41
      %p50 = scmp.eq.s32.totalorder %s21, 3
      %p51 = por %p49, %p50
      %p52 = scmp.ne.s32.totalorder %s41, %s42
      %p53 = scmp.eq.s32.totalorder %s21, 0
      %p54 = por %p52, %p53
      %p55 = scmp.ne.s32.totalorder %s41, %s42
      %p56 = scmp.eq.s32.totalorder %s22, 3
      %p57 = por %p55, %p56
      %p59 = scmp.ne.s32.totalorder %s42, %s58
      %p60 = scmp.eq.s32.totalorder %s22, 0
      %p61 = por %p59, %p60
      %s62 = ssub.s32 %s24, %s31
      %p63 = scmp.eq.s32.totalorder %s62, 0
      %s65 = sadd.s32 %s64, 1
      %s66 = scalar_select %p63, %s64, %s65
      %p69 = pneg %p63
      %p70 = scmp.eq.s32.totalorder %s16, 3
      %p71 = por %p69, %p70
      %p72 = scmp.ne.s32.totalorder %s64, %s67
      %p73 = scmp.eq.s32.totalorder %s16, 0
      %p74 = por %p72, %p73
      %p75 = scmp.ne.s32.totalorder %s64, %s67
      %p76 = scmp.eq.s32.totalorder %s21, 3
      %p77 = por %p75, %p76
      %p78 = scmp.ne.s32.totalorder %s67, %s68
      %p79 = scmp.eq.s32.totalorder %s21, 0
      %p80 = por %p78, %p79
      %p81 = scmp.ne.s32.totalorder %s67, %s68
      %p82 = scmp.eq.s32.totalorder %s22, 3
      %p83 = por %p81, %p82
      %p85 = scmp.ne.s32.totalorder %s68, %s84
      %p86 = scmp.eq.s32.totalorder %s22, 0
      %p87 = por %p85, %p86
      %s88 = ssub.s32 %s24, %s31
      %p89 = scmp.eq.s32.totalorder %s88, 0
      %s91 = sadd.s32 %s90, 1
      %s92 = scalar_select %p89, %s90, %s91
      %p95 = pneg %p89
      %p96 = scmp.eq.s32.totalorder %s16, 3
      %p97 = por %p95, %p96
      %p98 = scmp.ne.s32.totalorder %s90, %s93
      %p99 = scmp.eq.s32.totalorder %s16, 0
      %p100 = por %p98, %p99
      %p101 = scmp.ne.s32.totalorder %s90, %s93
      %p102 = scmp.eq.s32.totalorder %s21, 3
      %p103 = por %p101, %p102
      %p104 = scmp.ne.s32.totalorder %s93, %s94
      %p105 = scmp.eq.s32.totalorder %s21, 0
      %p106 = por %p104, %p105
      %p107 = scmp.ne.s32.totalorder %s93, %s94
      %p108 = scmp.eq.s32.totalorder %s22, 3
      %p109 = por %p107, %p108
      %p111 = scmp.ne.s32.totalorder %s94, %s110
      %p112 = scmp.eq.s32.totalorder %s22, 0
      %p113 = por %p111, %p112
      %s115 = sadd.s32 %s114, 1
      %p118 = scmp.eq.s32.totalorder %s16, 3
      %p119 = scmp.ne.s32.totalorder %s114, %s116
      %p120 = scmp.eq.s32.totalorder %s16, 0
      %p121 = por %p119, %p120
      %p122 = scmp.ne.s32.totalorder %s114, %s116
      %p123 = scmp.eq.s32.totalorder %s21, 3
      %p124 = por %p122, %p123
      %p125 = scmp.ne.s32.totalorder %s116, %s117
      %p126 = scmp.eq.s32.totalorder %s21, 0
      %p127 = por %p125, %p126
      %p128 = scmp.ne.s32.totalorder %s116, %s117
      %p129 = scmp.eq.s32.totalorder %s22, 3
      %p130 = por %p128, %p129
      %p132 = scmp.ne.s32.totalorder %s117, %s131
      %p133 = scmp.eq.s32.totalorder %s22, 0
      %p134 = por %p132, %p133
      %s135 = ssub.s32 %s23, %s35
      %p136 = scmp.eq.s32.totalorder %s135, 0
      %s138 = sadd.s32 %s137, 1
      %s139 = scalar_select %p136, %s137, %s138
      %p142 = pneg %p136
      %p143 = scmp.eq.s32.totalorder %s16, 3
      %p144 = por %p142, %p143
      %p145 = scmp.ne.s32.totalorder %s137, %s140
      %p146 = scmp.eq.s32.totalorder %s16, 0
      %p147 = por %p145, %p146
      %p148 = scmp.ne.s32.totalorder %s137, %s140
      %p149 = scmp.eq.s32.totalorder %s21, 3
      %p150 = por %p148, %p149
      %p151 = scmp.ne.s32.totalorder %s140, %s141
      %p152 = scmp.eq.s32.totalorder %s21, 0
      %p153 = por %p151, %p152
      %p154 = scmp.ne.s32.totalorder %s140, %s141
      %p155 = scmp.eq.s32.totalorder %s22, 3
      %p156 = por %p154, %p155
      %p158 = scmp.ne.s32.totalorder %s141, %s157
      %p159 = scmp.eq.s32.totalorder %s22, 0
      %p160 = por %p158, %p159
      %p161 = scmp.le.s32.totalorder 1, %s16
      %p162 = scmp.lt.s32.totalorder %s16, 5
      %p163 = pnand %p161, %p162
      %p164 = pneg %p163
      // Predicated region
      $region9: #{self_attention_wide_prepared.1} parent=5 // pred_check
        _
      $region10: #{self_attention_wide_prepared.1} parent=5 // pred_check_branch
        %166 = sbr.rel (%p163) target = $region12
      $region11: #{self_attention_wide_prepared.1} parent=5 // pred_region
        %s167 = ssub.s32 %s16, 1
        // Predicated region
        $region13: #{self_attention_wide_prepared.1} parent=11 // pred_check
          %p168 = pneg %p54
        $region14: #{self_attention_wide_prepared.1} parent=11 // pred_check_branch
          %170 = sbr.rel (%p168) target = $region16
        $region15: #{self_attention_wide_prepared.1} parent=11 // pred_region
          %s171 = smul.u32 2, %s25
          %p172 = scmp.lt.s32.totalorder %s171, 1
          %s173 = scalar_select %p172, %s171, 1
          %s174 = smul.addr %s173, 4
          %s175 = scalar_lea.vmem %s0, %s174
          %s176 = smul.u32 2, %s25
        $region16: #{self_attention_wide_prepared.1} parent=11 // pred_fallthru
          _
        // Predicated region
        $region17: #{self_attention_wide_prepared.1} parent=11 // pred_check
          %p177 = pneg %p127
        $region18: #{self_attention_wide_prepared.1} parent=11 // pred_check_branch
          %179 = sbr.rel (%p177) target = $region20
        $region19: #{self_attention_wide_prepared.1} parent=11 // pred_region
          _
        $region20: #{self_attention_wide_prepared.1} parent=11 // pred_fallthru
          _
      $region12: #{self_attention_wide_prepared.1} parent=5 // pred_fallthru
        _
      %p180 = scmp.lt.s32.totalorder %s16, 4
      // Predicated region
      $region21: #{self_attention_wide_prepared.1} parent=5 // pred_check
        %p181 = pneg %p180
      $region22: #{self_attention_wide_prepared.1} parent=5 // pred_check_branch
        %183 = sbr.rel (%p181) target = $region24
      $region23: #{self_attention_wide_prepared.1} parent=5 // pred_region
        // Predicated region
        $region25: #{self_attention_wide_prepared.1} parent=23 // pred_check
          %p184 = pneg %p74
        $region26: #{self_attention_wide_prepared.1} parent=23 // pred_check_branch
          %186 = sbr.rel (%p184) target = $region28
        $region27: #{self_attention_wide_prepared.1} parent=23 // pred_region
          %s187 = sand.u32 %s64, 1
          %s188 = scalar_lea.sflag [#allocation4], %s187
          %s189 = sand.u32 %s64, 1
          %s190 = smul.addr %s189, 192
          %s191 = scalar_lea.vmem [#allocation3], %s190
          %s193 = ssub.s32 3072, 3072
          %194 = vsyncadd %s188, %s193
          %s195 = smul.addr %s24, 48
          %s196 = smul.addr %s195, 64
          %s197 = scalar_lea.hbm %s1, %s196
          %s198 = sshll.u32 %s191, 4
          %s199 = int_to_ptr.vmem [resolvable:$true] %s198
          %204 = dma.hbm_to_vmem [thread:$0]  %s197, 3072, %s199, %s188, 192, 192, 12
        $region28: #{self_attention_wide_prepared.1} parent=23 // pred_fallthru
          _
        // Predicated region
        $region29: #{self_attention_wide_prepared.1} parent=23 // pred_check
          %p205 = pneg %p100
        $region30: #{self_attention_wide_prepared.1} parent=23 // pred_check_branch
          %207 = sbr.rel (%p205) target = $region32
        $region31: #{self_attention_wide_prepared.1} parent=23 // pred_region
          %s208 = sand.u32 %s90, 1
          %s209 = scalar_lea.sflag [#allocation6], %s208
          %s210 = sand.u32 %s90, 1
          %s211 = smul.addr %s210, 64
          %s212 = scalar_lea.vmem [#allocation5], %s211
          %s214 = ssub.s32 1024, 1024
          %215 = vsyncadd %s209, %s214
          %s216 = smul.addr %s24, 16
          %s217 = smul.addr %s216, 64
          %s218 = scalar_lea.hbm %s2, %s217
          %s219 = sshll.u32 %s212, 4
          %s220 = int_to_ptr.vmem [resolvable:$true] %s219
          %225 = dma.hbm_to_vmem [thread:$0]  %s218, 1024, %s220, %s209, 64, 64, 4
        $region32: #{self_attention_wide_prepared.1} parent=23 // pred_fallthru
          _
      $region24: #{self_attention_wide_prepared.1} parent=5 // pred_fallthru
        _
      %p226 = scmp.le.s32.totalorder 1, %s16
      %p227 = scmp.lt.s32.totalorder %s16, 5
      %p228 = pnand %p226, %p227
      %p229 = pneg %p228
      // Predicated region
      $region33: #{self_attention_wide_prepared.1} parent=5 // pred_check
        _
      $region34: #{self_attention_wide_prepared.1} parent=5 // pred_check_branch
        %231 = sbr.rel (%p228) target = $region36
      $region35: #{self_attention_wide_prepared.1} parent=5 // pred_region
        %s232 = ssub.s32 %s16, 1
        %s233 = sand.u32 %s67, 1
        %s234 = scalar_lea.sflag [#allocation4], %s233
        %s235 = sand.u32 %s67, 1
        %s236 = smul.addr %s235, 192
        %s237 = scalar_lea.vmem [#allocation3], %s236
        // Predicated region
        $region37: #{self_attention_wide_prepared.1} parent=35 // pred_check
          %p238 = pneg %p80
        $region38: #{self_attention_wide_prepared.1} parent=35 // pred_check_branch
          %240 = sbr.rel (%p238) target = $region40
        $region39: #{self_attention_wide_prepared.1} parent=35 // pred_region
          %241 = dma.done %s234, 3072
        $region40: #{self_attention_wide_prepared.1} parent=35 // pred_fallthru
          _
        %s242 = sand.u32 %s93, 1
        %s243 = scalar_lea.sflag [#allocation6], %s242
        %s244 = sand.u32 %s93, 1
        %s245 = smul.addr %s244, 64
        %s246 = scalar_lea.vmem [#allocation5], %s245
        // Predicated region
        $region41: #{self_attention_wide_prepared.1} parent=35 // pred_check
          %p247 = pneg %p106
        $region42: #{self_attention_wide_prepared.1} parent=35 // pred_check_branch
          %249 = sbr.rel (%p247) target = $region44
        $region43: #{self_attention_wide_prepared.1} parent=35 // pred_region
          %250 = dma.done %s243, 1024
        $region44: #{self_attention_wide_prepared.1} parent=35 // pred_fallthru
          _
        %s251 = smul.u32 2, %s25
        %p252 = scmp.lt.s32.totalorder %s251, 1
        %s253 = scalar_select %p252, %s251, 1
        %s254 = smul.addr %s253, 4
        %s255 = scalar_lea.vmem %s0, %s254
        %p256 = pneg %p54
        %p257 = pneg %p51
        %s258 = sand.u32 %s67, 1
        %s259 = scalar_lea.sflag [#allocation4], %s258
        %s260 = sand.u32 %s67, 1
        %s261 = smul.addr %s260, 192
        %s262 = scalar_lea.vmem [#allocation3], %s261
        %p263 = pneg %p80
        %p264 = pneg %p77
        %s265 = sand.u32 %s93, 1
        %s266 = scalar_lea.sflag [#allocation6], %s265
        %s267 = sand.u32 %s93, 1
        %s268 = smul.addr %s267, 64
        %s269 = scalar_lea.vmem [#allocation5], %s268
        %p270 = pneg %p106
        %p271 = pneg %p103
        %p272 = pneg %p127
        %p273 = pneg %p124
        %p274 = pneg %p153
        %p275 = pneg %p150
        %s276 = smul.u32 2, %s25
        %p277 = scmp.lt.s32.totalorder %s276, 1
        %s278 = scalar_select %p277, %s276, 1
        %s279 = smul.addr %s278, 4
        %s280 = scalar_lea.vmem %s4, %s279
        %s281 = smul.u32 2, %s25
        %p282 = scmp.lt.s32.totalorder %s281, 1
        %s283 = scalar_select %p282, %s281, 1
        %s284 = smul.addr %s283, 4
        %s285 = scalar_lea.vmem %s0, %s284
        %s286 = smul.u32 2, %s25
        %s287 = smul.u32 2, %s25
        %p288 = scmp.lt.s32.totalorder %s287, 1
        %s289 = scalar_select %p288, %s287, 1
        %s290 = smul.addr %s289, 4
        %s291 = scalar_lea.vmem %s4, %s290
        %s292 = smul.u32 2, %s25
        %p294 = scmp.eq.s32.totalorder %s26, 0
        // Predicated region
        $region45: #{self_attention_wide_prepared.1} parent=35 // pred_check
          %p295 = pneg %p294
        $region46: #{self_attention_wide_prepared.1} parent=35 // pred_check_branch
          %297 = sbr.rel (%p295) target = $region48
        $region47: #{self_attention_wide_prepared.1} parent=35 // pred_region
          %v298 = vld [vmem:[%s3] sm:$0x1]
          %v300 = vlaneseq
          %v301 = vshrl.u32 %v300, 7
          %v302 = vsub.s32 0, %v301
          %v303 = vrot.slane %v298, %v302
          %305 = vst [vmem:[#allocation2] sm:$0xff] %v303
          %306 = vst [vmem:[#allocation2 + $0x8] sm:$0xff] %v303
        $region48: #{self_attention_wide_prepared.1} parent=35 // pred_fallthru
          _
        %v307 = vld [vmem:[%s285] sm:$0xf]
        %v308 = vld [vmem:[%s285 + $0x4] sm:$0xf]
        %v309 = vld [vmem:[%s237] sm:$0xff]
        %v310 = vld [vmem:[%s237 + $0x8] sm:$0xf]
        %v311 = vld [vmem:[%s237 + $0xc] sm:$0xff]
        %v312 = vld [vmem:[%s237 + $0x14] sm:$0xf]
        %v313 = vld [vmem:[%s237 + $0x18] sm:$0xff]
        %v314 = vld [vmem:[%s237 + $0x20] sm:$0xf]
        %v315 = vld [vmem:[%s237 + $0x24] sm:$0xff]
        %v316 = vld [vmem:[%s237 + $0x2c] sm:$0xf]
        %v317 = vld [vmem:[%s237 + $0x30] sm:$0xff]
        %v318 = vld [vmem:[%s237 + $0x38] sm:$0xf]
        %v319 = vld [vmem:[%s237 + $0x3c] sm:$0xff]
        %v320 = vld [vmem:[%s237 + $0x44] sm:$0xf]
        %v321 = vld [vmem:[%s237 + $0x48] sm:$0xff]
        %v322 = vld [vmem:[%s237 + $0x50] sm:$0xf]
        %v323 = vld [vmem:[%s237 + $0x54] sm:$0xff]
        %v324 = vld [vmem:[%s237 + $0x5c] sm:$0xf]
        %v325 = vld [vmem:[%s237 + $0x60] sm:$0xff]
        %v326 = vld [vmem:[%s237 + $0x68] sm:$0xf]
        %v327 = vld [vmem:[%s237 + $0x6c] sm:$0xff]
        %v328 = vld [vmem:[%s237 + $0x74] sm:$0xf]
        %v329 = vld [vmem:[%s237 + $0x78] sm:$0xff]
        %v330 = vld [vmem:[%s237 + $0x80] sm:$0xf]
        %v331 = vld [vmem:[%s237 + $0x84] sm:$0xff]
        %v332 = vld [vmem:[%s237 + $0x8c] sm:$0xf]
        %v333 = vld [vmem:[%s237 + $0x90] sm:$0xff]
        %v334 = vld [vmem:[%s237 + $0x98] sm:$0xf]
        %v335 = vld [vmem:[%s237 + $0x9c] sm:$0xff]
        %v336 = vld [vmem:[%s237 + $0xa4] sm:$0xf]
        %v337 = vld [vmem:[%s237 + $0xa8] sm:$0xff]
        %v338 = vld [vmem:[%s237 + $0xb0] sm:$0xf]
        %v339 = vld [vmem:[%s237 + $0xb4] sm:$0xff]
        %v340 = vld [vmem:[%s237 + $0xbc] sm:$0xf]
        %v343 = vunpack.c.l.b16 %v307
        %v344 = vunpack.c.l.b16 %v308
        %v345 = vpack.c.b16 %v344, %v343
        %v379 = vunpack.c.l.b16 %v309
        %v380 = vunpack.c.h.b16 %v309
        %v381 = vunpack.c.l.b16 %v310
        %v382 = vunpack.c.l.b16 %v311
        %v383 = vunpack.c.h.b16 %v311
        %v384 = vunpack.c.l.b16 %v312
        %v385 = vunpack.c.l.b16 %v313
        %v386 = vunpack.c.h.b16 %v313
        %v387 = vunpack.c.l.b16 %v314
        %v388 = vunpack.c.l.b16 %v315
        %v389 = vunpack.c.h.b16 %v315
        %v390 = vunpack.c.l.b16 %v316
        %v391 = vunpack.c.l.b16 %v317
        %v392 = vunpack.c.h.b16 %v317
        %v393 = vunpack.c.l.b16 %v318
        %v394 = vunpack.c.l.b16 %v319
        %v395 = vunpack.c.h.b16 %v319
        %v396 = vunpack.c.l.b16 %v320
        %v397 = vunpack.c.l.b16 %v321
        %v398 = vunpack.c.h.b16 %v321
        %v399 = vunpack.c.l.b16 %v322
        %v400 = vunpack.c.l.b16 %v323
        %v401 = vunpack.c.h.b16 %v323
        %v402 = vunpack.c.l.b16 %v324
        %v403 = vunpack.c.l.b16 %v325
        %v404 = vunpack.c.h.b16 %v325
        %v405 = vunpack.c.l.b16 %v326
        %v406 = vunpack.c.l.b16 %v327
        %v407 = vunpack.c.h.b16 %v327
        %v408 = vunpack.c.l.b16 %v328
        %v409 = vunpack.c.l.b16 %v329
        %v410 = vunpack.c.h.b16 %v329
        %v411 = vunpack.c.l.b16 %v330
        %v412 = vunpack.c.l.b16 %v331
        %v413 = vunpack.c.h.b16 %v331
        %v414 = vunpack.c.l.b16 %v332
        %v415 = vunpack.c.l.b16 %v333
        %v416 = vunpack.c.h.b16 %v333
        %v417 = vunpack.c.l.b16 %v334
        %v418 = vunpack.c.l.b16 %v335
        %v419 = vunpack.c.h.b16 %v335
        %v420 = vunpack.c.l.b16 %v336
        %v421 = vunpack.c.l.b16 %v337
        %v422 = vunpack.c.h.b16 %v337
        %v423 = vunpack.c.l.b16 %v338
        %v424 = vunpack.c.l.b16 %v339
        %v425 = vunpack.c.h.b16 %v339
        %v426 = vunpack.c.l.b16 %v340
        %v427 = vpack.c.b16 %v382, %v379
        %v428 = vpack.c.b16 %v383, %v380
        %v429 = vpack.c.b16 %v384, %v381
        %v430 = vpack.c.b16 %v388, %v385
        %v431 = vpack.c.b16 %v389, %v386
        %v432 = vpack.c.b16 %v390, %v387
        %v433 = vpack.c.b16 %v394, %v391
        %v434 = vpack.c.b16 %v395, %v392
        %v435 = vpack.c.b16 %v396, %v393
        %v436 = vpack.c.b16 %v400, %v397
        %v437 = vpack.c.b16 %v401, %v398
        %v438 = vpack.c.b16 %v402, %v399
        %v439 = vpack.c.b16 %v406, %v403
        %v440 = vpack.c.b16 %v407, %v404
        %v441 = vpack.c.b16 %v408, %v405
        %v442 = vpack.c.b16 %v412, %v409
        %v443 = vpack.c.b16 %v413, %v410
        %v444 = vpack.c.b16 %v414, %v411
        %v445 = vpack.c.b16 %v418, %v415
        %v446 = vpack.c.b16 %v419, %v416
        %v447 = vpack.c.b16 %v420, %v417
        %v448 = vpack.c.b16 %v424, %v421
        %v449 = vpack.c.b16 %v425, %v422
        %v450 = vpack.c.b16 %v426, %v423
        %475 = vmatprep.subr.bf16.mxu0 %v428
        %476 = vmatpush1.bf16.msra.mxu0 %v427
        %477 = vmatprep.subr.bf16.mxu0 %v431
        %478 = vmatpush1.bf16.msra.mxu0 %v430
        %479 = vmatprep.subr.bf16.mxu0 %v434
        %480 = vmatpush1.bf16.msra.mxu0 %v433
        %481 = vmatprep.subr.bf16.mxu0 %v437
        %482 = vmatpush1.bf16.msra.mxu0 %v436
        %483 = vmatprep.subr.bf16.mxu0 %v440
        %484 = vmatpush1.bf16.msra.mxu0 %v439
        %485 = vmatprep.subr.bf16.mxu0 %v443
        %486 = vmatpush1.bf16.msra.mxu0 %v442
        %487 = vmatprep.subr.bf16.mxu0 %v446
        %488 = vmatpush1.bf16.msra.mxu0 %v445
        %489 = vmatprep.subr.bf16.mxu0 %v449
        %490 = vmatpush1.bf16.msra.mxu0 %v448
        %491 = vmatprep.subr.bf16.mxu0 0
        %492 = vmatpush1.bf16.msra.mxu0 0
        %493 = vmatprep.subr.bf16.mxu0 0
        %494 = vmatpush1.bf16.msra.mxu0 0
        %495 = vmatprep.subr.bf16.mxu0 0
        %496 = vmatpush1.bf16.msra.mxu0 0
        %497 = vmatprep.subr.bf16.mxu0 0
        %498 = vmatpush1.bf16.msra.mxu0 0
        %499 = vmatprep.subr.bf16.mxu0 0
        %500 = vmatpush1.bf16.msra.mxu0 0
        %501 = vmatprep.subr.bf16.mxu0 0
        %502 = vmatpush1.bf16.msra.mxu0 0
        %503 = vmatprep.subr.bf16.mxu0 0
        %504 = vmatpush1.bf16.msra.mxu0 0
        %505 = vmatprep.subr.bf16.mxu0 0
        %506 = vmatpush1.bf16.msra.mxu0 0
        %507 = vmatprep.mubr.bf16.mxu0 0
        %508 = vmatmul.mubr.bf16.gmra.mrb[0].mxu0 %v345
        %v509 = vpop.f32.mrb[0].mxu0
        %v510 = vadd.f32 0.0, %v509
        %v511 = vpop.f32.mrb[0].mxu0
        %v512 = vadd.f32 0.0, %v511
        %v513 = vpop.f32.mrb[0].mxu0
        %v514 = vadd.f32 0.0, %v513
        %v515 = vpop.f32.mrb[0].mxu0
        %v516 = vadd.f32 0.0, %v515
        %517 = vdwg.mxu0
        %518 = vmatprep.subr.bf16.mxu0 0
        %519 = vmatpush1.bf16.msra.mxu0 %v429
        %520 = vmatprep.subr.bf16.mxu0 0
        %521 = vmatpush1.bf16.msra.mxu0 %v432
        %522 = vmatprep.subr.bf16.mxu0 0
        %523 = vmatpush1.bf16.msra.mxu0 %v435
        %524 = vmatprep.subr.bf16.mxu0 0
        %525 = vmatpush1.bf16.msra.mxu0 %v438
        %526 = vmatprep.subr.bf16.mxu0 0
        %527 = vmatpush1.bf16.msra.mxu0 %v441
        %528 = vmatprep.subr.bf16.mxu0 0
        %529 = vmatpush1.bf16.msra.mxu0 %v444
        %530 = vmatprep.subr.bf16.mxu0 0
        %531 = vmatpush1.bf16.msra.mxu0 %v447
        %532 = vmatprep.subr.bf16.mxu0 0
        %533 = vmatpush1.bf16.msra.mxu0 %v450
        %534 = vmatprep.subr.bf16.mxu0 0
        %535 = vmatpush1.bf16.msra.mxu0 0
        %536 = vmatprep.subr.bf16.mxu0 0
        %537 = vmatpush1.bf16.msra.mxu0 0
        %538 = vmatprep.subr.bf16.mxu0 0
        %539 = vmatpush1.bf16.msra.mxu0 0
        %540 = vmatprep.subr.bf16.mxu0 0
        %541 = vmatpush1.bf16.msra.mxu0 0
        %542 = vmatprep.subr.bf16.mxu0 0
        %543 = vmatpush1.bf16.msra.mxu0 0
        %544 = vmatprep.subr.bf16.mxu0 0
        %545 = vmatpush1.bf16.msra.mxu0 0
        %546 = vmatprep.subr.bf16.mxu0 0
        %547 = vmatpush1.bf16.msra.mxu0 0
        %548 = vmatprep.subr.bf16.mxu0 0
        %549 = vmatpush1.bf16.msra.mxu0 0
        %550 = vmatprep.mubr.bf16.mxu0 0
        %551 = vmatmul.mubr.bf16.gmra.mrb[0].mxu0 %v345
        %v552 = vpop.f32.mrb[0].mxu0
        %v553 = vadd.f32 0.0, %v552
        %v554 = vpop.f32.mrb[0].mxu0
        %v555 = vpop.f32.mrb[0].mxu0
        %v556 = vadd.f32 0.0, %v555
        %v557 = vpop.f32.mrb[0].mxu0
        %558 = vdwg.mxu0
        %v559 = vpack.c.bf16 %v514, %v510
        %v561 = vunpack.c.l.b16 %v559
        %v562 = vunpack.c.h.b16 %v559
        %v563 = vpack.c.b16 %v561, %v561
        %v564 = vpack.c.b16 %v562, %v562
        %v567 = vpack.c.bf16 %v516, %v512
        %v569 = vunpack.c.l.b16 %v567
        %v570 = vunpack.c.h.b16 %v567
        %v571 = vpack.c.b16 %v569, %v569
        %v572 = vpack.c.b16 %v570, %v570
        %v575 = vpack.c.bf16 %v556, %v553
        %v577 = vunpack.c.l.b16 %v575
        %v578 = vunpack.c.h.b16 %v575
        %v579 = vpack.c.b16 %v577, %v577
        %v580 = vpack.c.b16 %v578, %v578
        %581 = vmatprep.subr.bf16.mxu0 0
        %582 = vmatpush1.bf16.xpose.msra.mxu0 %v571
        %583 = vmatprep.subr.bf16.mxu0 0
        %584 = vmatpush1.bf16.xpose.msra.mxu0 0
        %585 = vmatprep.subr.bf16.mxu0 0
        %586 = vmatpush1.bf16.xpose.msra.mxu0 0
        %587 = vmatprep.subr.bf16.mxu0 0
        %588 = vmatpush1.bf16.xpose.msra.mxu0 0
        %589 = vmatprep.subr.bf16.mxu0 0
        %590 = vmatpush1.bf16.xpose.msra.mxu0 0
        %591 = vmatprep.subr.bf16.mxu0 0
        %592 = vmatpush1.bf16.xpose.msra.mxu0 0
        %593 = vmatprep.subr.bf16.mxu0 0
        %594 = vmatpush1.bf16.xpose.msra.mxu0 0
        %595 = vmatprep.subr.bf16.mxu0 0
        %596 = vmatpush1.bf16.xpose.msra.mxu0 0
        %597 = vmatprep.subr.bf16.mxu0 0
        %598 = vmatpush1.bf16.xpose.msra.mxu0 0
        %599 = vmatprep.subr.bf16.mxu0 0
        %600 = vmatpush1.bf16.xpose.msra.mxu0 0
        %601 = vmatprep.subr.bf16.mxu0 0
        %602 = vmatpush1.bf16.xpose.msra.mxu0 0
        %603 = vmatprep.subr.bf16.mxu0 0
        %604 = vmatpush1.bf16.xpose.msra.mxu0 0
        %605 = vmatprep.subr.bf16.mxu0 0
        %606 = vmatpush1.bf16.xpose.msra.mxu0 0
        %607 = vmatprep.subr.bf16.mxu0 0
        %608 = vmatpush1.bf16.xpose.msra.mxu0 0
        %609 = vmatprep.subr.bf16.mxu0 0
        %610 = vmatpush1.bf16.xpose.msra.mxu0 0
        %611 = vmatprep.subr.bf16.mxu0 0
        %612 = vmatpush1.bf16.xpose.msra.mxu0 0
        %613 = vmatprep.mubr.bf16.mxu0 0
        %614 = vmatmul.mubr.bf16.gmra.mrb[0].mxu0 %v563
        %v615 = vpop.f32.mrb[0].mxu0
        %v616 = vadd.f32 0.0, %v615
        %v617 = vpop.f32.mrb[0].mxu0
        %v618 = vpop.f32.mrb[0].mxu0
        %v619 = vpop.f32.mrb[0].mxu0
        %620 = vdwg.mxu0
        %621 = vmatprep.subr.bf16.mxu0 0
        %622 = vmatpush1.bf16.xpose.msra.mxu0 %v572
        %623 = vmatprep.subr.bf16.mxu0 0
        %624 = vmatpush1.bf16.xpose.msra.mxu0 0
        %625 = vmatprep.subr.bf16.mxu0 0
        %626 = vmatpush1.bf16.xpose.msra.mxu0 0
        %627 = vmatprep.subr.bf16.mxu0 0
        %628 = vmatpush1.bf16.xpose.msra.mxu0 0
        %629 = vmatprep.subr.bf16.mxu0 0
        %630 = vmatpush1.bf16.xpose.msra.mxu0 0
        %631 = vmatprep.subr.bf16.mxu0 0
        %632 = vmatpush1.bf16.xpose.msra.mxu0 0
        %633 = vmatprep.subr.bf16.mxu0 0
        %634 = vmatpush1.bf16.xpose.msra.mxu0 0
        %635 = vmatprep.subr.bf16.mxu0 0
        %636 = vmatpush1.bf16.xpose.msra.mxu0 0
        %637 = vmatprep.subr.bf16.mxu0 0
        %638 = vmatpush1.bf16.xpose.msra.mxu0 0
        %639 = vmatprep.subr.bf16.mxu0 0
        %640 = vmatpush1.bf16.xpose.msra.mxu0 0
        %641 = vmatprep.subr.bf16.mxu0 0
        %642 = vmatpush1.bf16.xpose.msra.mxu0 0
        %643 = vmatprep.subr.bf16.mxu0 0
        %644 = vmatpush1.bf16.xpose.msra.mxu0 0
        %645 = vmatprep.subr.bf16.mxu0 0
        %646 = vmatpush1.bf16.xpose.msra.mxu0 0
        %647 = vmatprep.subr.bf16.mxu0 0
        %648 = vmatpush1.bf16.xpose.msra.mxu0 0
        %649 = vmatprep.subr.bf16.mxu0 0
        %650 = vmatpush1.bf16.xpose.msra.mxu0 0
        %651 = vmatprep.subr.bf16.mxu0 0
        %652 = vmatpush1.bf16.xpose.msra.mxu0 0
        %653 = vmatprep.mubr.bf16.mxu0 0
        %654 = vmatmul.mubr.bf16.gmra.mrb[0].mxu0 %v564
        %v655 = vpop.f32.mrb[0].mxu0
        %v656 = vadd.f32 0.0, %v655
        %v657 = vpop.f32.mrb[0].mxu0
        %v658 = vpop.f32.mrb[0].mxu0
        %v659 = vpop.f32.mrb[0].mxu0
        %660 = vdwg.mxu0
        %vm661 = vcmask 64512
        %v662 = vsel %vm661, %v616, -inf
        %663 = vmax.xlane.f32.xlu0 %v662
        %v664 = vpop.xlane.xlu0 %663
        %v665 = vsel %vm661, %v656, -inf
        %666 = vmax.xlane.f32.xlu0 %v665
        %v667 = vpop.xlane.xlu0 %666
        %v668 = vsub.f32 %v616, %v664
        %v669 = vsub.f32 %v656, %v667
        %v670 = vmul.f32 %v668, 1.442695
        %v671 = vpow.pop %v670
        %v672 = vmul.f32 %v669, 1.442695
        %v673 = vpow.pop %v672
        %v674 = vsel %vm661, %v671, 0.0
        %675 = vadd.xlane.f32.xlu0 %v674
        %v676 = vpop.xlane.xlu0 %675
        %v677 = vsel %vm661, %v673, 0.0
        %678 = vadd.xlane.f32.xlu0 %v677
        %v679 = vpop.xlane.xlu0 %678
        %v680 = vrcp.pop %v676
        %v681 = vrcp.pop %v679
        %v682 = vmul.f32 %v671, %v680
        %v683 = vmul.f32 %v673, %v681
        %v684 = vpack.c.bf16 %v682, %v682
        %v685 = vpack.c.bf16 %v683, %v683
        %v687 = vsel %vm661, %v684, 0
        %vm689 = vcmask 1043456
        %v691 = vsel %vm689, %v579, 0
        %693 = vmatprep.subr.bf16.mxu0 0
        %694 = vmatpush1.bf16.msra.mxu0 %v691
        %695 = vmatprep.subr.bf16.mxu0 0
        %696 = vmatpush1.bf16.msra.mxu0 0
        %697 = vmatprep.subr.bf16.mxu0 0
        %698 = vmatpush1.bf16.msra.mxu0 0
        %699 = vmatprep.subr.bf16.mxu0 0
        %700 = vmatpush1.bf16.msra.mxu0 0
        %701 = vmatprep.subr.bf16.mxu0 0
        %702 = vmatpush1.bf16.msra.mxu0 0
        %703 = vmatprep.subr.bf16.mxu0 0
        %704 = vmatpush1.bf16.msra.mxu0 0
        %705 = vmatprep.subr.bf16.mxu0 0
        %706 = vmatpush1.bf16.msra.mxu0 0
        %707 = vmatprep.subr.bf16.mxu0 0
        %708 = vmatpush1.bf16.msra.mxu0 0
        %709 = vmatprep.subr.bf16.mxu0 0
        %710 = vmatpush1.bf16.msra.mxu0 0
        %711 = vmatprep.subr.bf16.mxu0 0
        %712 = vmatpush1.bf16.msra.mxu0 0
        %713 = vmatprep.subr.bf16.mxu0 0
        %714 = vmatpush1.bf16.msra.mxu0 0
        %715 = vmatprep.subr.bf16.mxu0 0
        %716 = vmatpush1.bf16.msra.mxu0 0
        %717 = vmatprep.subr.bf16.mxu0 0
        %718 = vmatpush1.bf16.msra.mxu0 0
        %719 = vmatprep.subr.bf16.mxu0 0
        %720 = vmatpush1.bf16.msra.mxu0 0
        %721 = vmatprep.subr.bf16.mxu0 0
        %722 = vmatpush1.bf16.msra.mxu0 0
        %723 = vmatprep.subr.bf16.mxu0 0
        %724 = vmatpush1.bf16.msra.mxu0 0
        %725 = vmatprep.mubr.bf16.mxu0 0
        %726 = vmatmul.mubr.bf16.gmra.mrb[0].mxu0 %v687
        %v727 = vpop.f32.mrb[0].mxu0
        %v728 = vadd.f32 0.0, %v727
        %v729 = vpop.f32.mrb[0].mxu0
        %v730 = vpop.f32.mrb[0].mxu0
        %v731 = vpop.f32.mrb[0].mxu0
        %732 = vdwg.mxu0
        %v734 = vsel %vm661, %v685, 0
        %v737 = vsel %vm689, %v580, 0
        %739 = vmatprep.subr.bf16.mxu0 0
        %740 = vmatpush1.bf16.msra.mxu0 %v737
        %741 = vmatprep.subr.bf16.mxu0 0
        %742 = vmatpush1.bf16.msra.mxu0 0
        %743 = vmatprep.subr.bf16.mxu0 0
        %744 = vmatpush1.bf16.msra.mxu0 0
        %745 = vmatprep.subr.bf16.mxu0 0
        %746 = vmatpush1.bf16.msra.mxu0 0
        %747 = vmatprep.subr.bf16.mxu0 0
        %748 = vmatpush1.bf16.msra.mxu0 0
        %749 = vmatprep.subr.bf16.mxu0 0
        %750 = vmatpush1.bf16.msra.mxu0 0
        %751 = vmatprep.subr.bf16.mxu0 0
        %752 = vmatpush1.bf16.msra.mxu0 0
        %753 = vmatprep.subr.bf16.mxu0 0
        %754 = vmatpush1.bf16.msra.mxu0 0
        %755 = vmatprep.subr.bf16.mxu0 0
        %756 = vmatpush1.bf16.msra.mxu0 0
        %757 = vmatprep.subr.bf16.mxu0 0
        %758 = vmatpush1.bf16.msra.mxu0 0
        %759 = vmatprep.subr.bf16.mxu0 0
        %760 = vmatpush1.bf16.msra.mxu0 0
        %761 = vmatprep.subr.bf16.mxu0 0
        %762 = vmatpush1.bf16.msra.mxu0 0
        %763 = vmatprep.subr.bf16.mxu0 0
        %764 = vmatpush1.bf16.msra.mxu0 0
        %765 = vmatprep.subr.bf16.mxu0 0
        %766 = vmatpush1.bf16.msra.mxu0 0
        %767 = vmatprep.subr.bf16.mxu0 0
        %768 = vmatpush1.bf16.msra.mxu0 0
        %769 = vmatprep.subr.bf16.mxu0 0
        %770 = vmatpush1.bf16.msra.mxu0 0
        %771 = vmatprep.mubr.bf16.mxu0 0
        %772 = vmatmul.mubr.bf16.gmra.mrb[0].mxu0 %v734
        %v773 = vpop.f32.mrb[0].mxu0
        %v774 = vadd.f32 0.0, %v773
        %v775 = vpop.f32.mrb[0].mxu0
        %v776 = vpop.f32.mrb[0].mxu0
        %v777 = vpop.f32.mrb[0].mxu0
        %778 = vdwg.mxu0
        %v779 = vpack.c.bf16 %v774, %v728
        %v780 = vld [vmem:[%s246] sm:$0xf]
        %v781 = vld [vmem:[%s246 + $0x4] sm:$0xf]
        %v782 = vld [vmem:[%s246 + $0x8] sm:$0xf]
        %v783 = vld [vmem:[%s246 + $0xc] sm:$0xf]
        %v784 = vld [vmem:[%s246 + $0x10] sm:$0xf]
        %v785 = vld [vmem:[%s246 + $0x14] sm:$0xf]
        %v786 = vld [vmem:[%s246 + $0x18] sm:$0xf]
        %v787 = vld [vmem:[%s246 + $0x1c] sm:$0xf]
        %v788 = vld [vmem:[%s246 + $0x20] sm:$0xf]
        %v789 = vld [vmem:[%s246 + $0x24] sm:$0xf]
        %v790 = vld [vmem:[%s246 + $0x28] sm:$0xf]
        %v791 = vld [vmem:[%s246 + $0x2c] sm:$0xf]
        %v792 = vld [vmem:[%s246 + $0x30] sm:$0xf]
        %v793 = vld [vmem:[%s246 + $0x34] sm:$0xf]
        %v794 = vld [vmem:[%s246 + $0x38] sm:$0xf]
        %v795 = vld [vmem:[%s246 + $0x3c] sm:$0xf]
        %v812 = vunpack.c.l.b16 %v780
        %v813 = vunpack.c.l.b16 %v781
        %v814 = vunpack.c.l.b16 %v782
        %v815 = vunpack.c.l.b16 %v783
        %v816 = vunpack.c.l.b16 %v784
        %v817 = vunpack.c.l.b16 %v785
        %v818 = vunpack.c.l.b16 %v786
        %v819 = vunpack.c.l.b16 %v787
        %v820 = vunpack.c.l.b16 %v788
        %v821 = vunpack.c.l.b16 %v789
        %v822 = vunpack.c.l.b16 %v790
        %v823 = vunpack.c.l.b16 %v791
        %v824 = vunpack.c.l.b16 %v792
        %v825 = vunpack.c.l.b16 %v793
        %v826 = vunpack.c.l.b16 %v794
        %v827 = vunpack.c.l.b16 %v795
        %v828 = vpack.c.b16 %v813, %v812
        %v829 = vpack.c.b16 %v815, %v814
        %v830 = vpack.c.b16 %v817, %v816
        %v831 = vpack.c.b16 %v819, %v818
        %v832 = vpack.c.b16 %v821, %v820
        %v833 = vpack.c.b16 %v823, %v822
        %v834 = vpack.c.b16 %v825, %v824
        %v835 = vpack.c.b16 %v827, %v826
        %844 = vmatprep.subr.bf16.mxu0 0
        %845 = vmatpush1.bf16.msra.mxu0 %v828
        %846 = vmatprep.subr.bf16.mxu0 0
        %847 = vmatpush1.bf16.msra.mxu0 %v829
        %848 = vmatprep.subr.bf16.mxu0 0
        %849 = vmatpush1.bf16.msra.mxu0 %v830
        %850 = vmatprep.subr.bf16.mxu0 0
        %851 = vmatpush1.bf16.msra.mxu0 %v831
        %852 = vmatprep.subr.bf16.mxu0 0
        %853 = vmatpush1.bf16.msra.mxu0 %v832
        %854 = vmatprep.subr.bf16.mxu0 0
        %855 = vmatpush1.bf16.msra.mxu0 %v833
        %856 = vmatprep.subr.bf16.mxu0 0
        %857 = vmatpush1.bf16.msra.mxu0 %v834
        %858 = vmatprep.subr.bf16.mxu0 0
        %859 = vmatpush1.bf16.msra.mxu0 %v835
        %860 = vmatprep.subr.bf16.mxu0 0
        %861 = vmatpush1.bf16.msra.mxu0 0
        %862 = vmatprep.subr.bf16.mxu0 0
        %863 = vmatpush1.bf16.msra.mxu0 0
        %864 = vmatprep.subr.bf16.mxu0 0
        %865 = vmatpush1.bf16.msra.mxu0 0
        %866 = vmatprep.subr.bf16.mxu0 0
        %867 = vmatpush1.bf16.msra.mxu0 0
        %868 = vmatprep.subr.bf16.mxu0 0
        %869 = vmatpush1.bf16.msra.mxu0 0
        %870 = vmatprep.subr.bf16.mxu0 0
        %871 = vmatpush1.bf16.msra.mxu0 0
        %872 = vmatprep.subr.bf16.mxu0 0
        %873 = vmatpush1.bf16.msra.mxu0 0
        %874 = vmatprep.subr.bf16.mxu0 0
        %875 = vmatpush1.bf16.msra.mxu0 0
        %876 = vmatprep.mubr.bf16.mxu0 0
        %877 = vmatmul.mubr.bf16.gmra.mrb[0].mxu0 %v779
        %v878 = vpop.f32.mrb[0].mxu0
        %v879 = vadd.f32 0.0, %v878
        %v880 = vpop.f32.mrb[0].mxu0
        %v881 = vpop.f32.mrb[0].mxu0
        %v882 = vadd.f32 0.0, %v881
        %v883 = vpop.f32.mrb[0].mxu0
        %884 = vdwg.mxu0
        %v885 = vld [vmem:[#allocation2] sm:$0xff]
        %v886 = vld [vmem:[#allocation2 + $0x8] sm:$0xff]
        %v887 = vadd.f32 %v885, %v879
        %v888 = vadd.f32 %v886, %v882
        %889 = vst [vmem:[#allocation2] sm:$0xff] %v887
        %890 = vst [vmem:[#allocation2 + $0x8] sm:$0xff] %v888
        %p891 = scmp.eq.s32.totalorder %s26, 3
        // Predicated region
        $region49: #{self_attention_wide_prepared.1} parent=35 // pred_check
          %p892 = pneg %p891
        $region50: #{self_attention_wide_prepared.1} parent=35 // pred_check_branch
          %894 = sbr.rel (%p892) target = $region52
        $region51: #{self_attention_wide_prepared.1} parent=35 // pred_region
          %v895 = vld [vmem:[#allocation2] sm:$0xff]
          %v896 = vld [vmem:[#allocation2 + $0x8] sm:$0xff]
          %v897 = vpack.c.bf16 %v895, %v895
          %v898 = vpack.c.bf16 %v896, %v896
          %899 = vst [vmem:[%s291] sm:$0xf] %v897
          %900 = vst [vmem:[%s291 + $0x4] sm:$0xf] %v898
        $region52: #{self_attention_wide_prepared.1} parent=35 // pred_fallthru
          _
        %s901 = smul.u32 2, %s25
        %p902 = scmp.lt.s32.totalorder %s901, 1
        %s903 = scalar_select %p902, %s901, 1
        %s904 = smul.addr %s903, 4
        %s905 = scalar_lea.vmem %s4, %s904
        // Predicated region
        $region53: #{self_attention_wide_prepared.1} parent=35 // pred_check
          %p906 = pneg %p150
        $region54: #{self_attention_wide_prepared.1} parent=35 // pred_check_branch
          %908 = sbr.rel (%p906) target = $region56
        $region55: #{self_attention_wide_prepared.1} parent=35 // pred_region
          %s909 = smul.u32 2, %s25
        $region56: #{self_attention_wide_prepared.1} parent=35 // pred_fallthru
          _
        // Predicated region
        $region57: #{self_attention_wide_prepared.1} parent=35 // pred_check
          %p910 = pneg %p150
        $region58: #{self_attention_wide_prepared.1} parent=35 // pred_check_branch
          %912 = sbr.rel (%p910) target = $region60
        $region59: #{self_attention_wide_prepared.1} parent=35 // pred_region
          %s913 = smul.u32 2, %s25
          %p914 = scmp.lt.s32.totalorder %s913, 1
          %s915 = scalar_select %p914, %s913, 1
          %s916 = smul.addr %s915, 4
          %s917 = scalar_lea.vmem %s4, %s916
        $region60: #{self_attention_wide_prepared.1} parent=35 // pred_fallthru
          _
      $region36: #{self_attention_wide_prepared.1} parent=5 // pred_fallthru
        _
      %p918 = scmp.le.s32.totalorder 2, %s16
      // Predicated region
      $region61: #{self_attention_wide_prepared.1} parent=5 // pred_check
        %p919 = pneg %p918
      $region62: #{self_attention_wide_prepared.1} parent=5 // pred_check_branch
        %921 = sbr.rel (%p919) target = $region64
      $region63: #{self_attention_wide_prepared.1} parent=5 // pred_region
        %s922 = ssub.s32 %s16, 2
      $region64: #{self_attention_wide_prepared.1} parent=5 // pred_fallthru
        _
    $region6: #{self_attention_wide_prepared.1} parent=1 // loop_footer
      %s20 = sadd.s32 1, %s16
    $region7: #{self_attention_wide_prepared.1} parent=1 // loop_footer_branch
      %15 = sbr.rel target = $region3
    $region8: #{self_attention_wide_prepared.1} parent=1 // loop_exit
      _
    %923 = vsyncpa [#allocation4], 1
    %s924 = scalar_lea.sflag [#allocation4], 1
    %925 = vsyncpa %s924, 1
    %926 = vsyncpa [#allocation6], 1
    %s927 = scalar_lea.sflag [#allocation6], 1
    %928 = vsyncpa %s927, 1

</llo_original>
